<compile_context>
chip_gen: v5e
topology: v5e:2x2
jax: 0.10.0
libtpu: 0.0.40
codegen_flags: <defaults>
</compile_context>

<pallas_src>
import functools

import jax
import jax.numpy as jnp
from jax.experimental import pallas as pl
from jax.experimental.pallas import tpu as pltpu

_LANE = 128


def _round_up(n, m):
    return m * ((n + m - 1) // m)


def mlp_kernel(x_ref, w1_ref, b1_ref, w2_ref, b2_ref, w3_ref, b3_ref, o_ref):
    # Fused 3-layer MLP on one batch tile:
    #   relu(relu(x @ W1 + b1) @ W2 + b2) @ W3 + b3
    # Matmul operands are (optionally) bf16 -> MXU; accumulation, bias and ReLU in f32 (VPU).
    x = x_ref[...]
    h1 = jnp.dot(x, w1_ref[...], preferred_element_type=jnp.float32) + b1_ref[...]
    h1 = jnp.maximum(h1, 0.0).astype(w2_ref.dtype)
    h2 = jnp.dot(h1, w2_ref[...], preferred_element_type=jnp.float32) + b2_ref[...]
    h2 = jnp.maximum(h2, 0.0).astype(w3_ref.dtype)
    out = jnp.dot(h2, w3_ref[...], preferred_element_type=jnp.float32) + b3_ref[...]
    o_ref[...] = out.astype(o_ref.dtype)


@functools.partial(jax.jit, static_argnames=("block_b", "use_bf16"))
def mlp_forward(x, w1, b1, w2, b2, w3, b3, *, block_b=128, use_bf16=True):
    B, D_in = x.shape
    D_h = w1.shape[1]
    D_out = w3.shape[1]

    # --- Batch tiling (ragged batches padded; on v7x prefer an even number of steps) ---
    num_blocks = pl.cdiv(B, block_b)
    B_pad = num_blocks * block_b
    if B_pad != B:
        x = jnp.pad(x, ((0, B_pad - B), (0, 0)))

    # --- Lane-dense output: pad D_out to a multiple of 128 (unmasked vst) ---
    D_out_pad = _round_up(D_out, _LANE)
    if D_out_pad != D_out:
        w3 = jnp.pad(w3, ((0, 0), (0, D_out_pad - D_out)))
        b3 = jnp.pad(b3, ((0, 0), (0, D_out_pad - D_out)))

    # --- bf16 MXU operands with f32 accumulation; biases stay f32 ---
    mxu_dtype = jnp.bfloat16 if use_bf16 else x.dtype
    x_c = x.astype(mxu_dtype)
    w1_c, w2_c, w3_c = (w.astype(mxu_dtype) for w in (w1, w2, w3))
    b1_c, b2_c, b3_c = (b.astype(jnp.float32) for b in (b1, b2, b3))

    # --- VMEM budget (weights + x/out tiles are each double-buffered by BlockSpec) ---
    # TODO(synk): for large hidden dims (W2 no longer VMEM-resident, esp. v7x 64 MiB) switch
    # to a K-tiled reduction grid axis with an f32 accumulator scratch + pl.when init/finalize.
    in_itemsize = 2 if use_bf16 else 4
    weight_bytes = (D_in * D_h + D_h * D_h + D_h * D_out_pad) * in_itemsize
    bias_bytes = (2 * D_h + D_out_pad) * 4
    tile_bytes = block_b * D_in * in_itemsize + block_b * D_out_pad * 4
    vmem_need = 2 * (weight_bytes + bias_bytes + tile_bytes)
    assert vmem_need <= (56 << 20), "weights too large for VMEM-resident design (see TODO)"
    vmem_limit = min(max(vmem_need + (4 << 20), 16 << 20), 56 << 20)

    flops = 2 * B_pad * (D_in * D_h + D_h * D_h + D_h * D_out_pad)
    bytes_accessed = (
        B_pad * D_in * in_itemsize          # x
        + weight_bytes + bias_bytes         # weights / biases (fetched once)
        + B_pad * D_out_pad * 4             # output
    )

    grid = (num_blocks,)
    out_padded = pl.pallas_call(
        mlp_kernel,
        out_shape=jax.ShapeDtypeStruct((B_pad, D_out_pad), jnp.float32),
        grid_spec=pltpu.PrefetchScalarGridSpec(
            num_scalar_prefetch=0,
            grid=grid,
            in_specs=[
                pl.BlockSpec((block_b, D_in), lambda i: (i, 0)),     # x tile over batch
                pl.BlockSpec((D_in, D_h), lambda i: (0, 0)),         # W1 (full, VMEM-resident)
                pl.BlockSpec((1, D_h), lambda i: (0, 0)),            # b1 (f32)
                pl.BlockSpec((D_h, D_h), lambda i: (0, 0)),          # W2
                pl.BlockSpec((1, D_h), lambda i: (0, 0)),            # b2
                pl.BlockSpec((D_h, D_out_pad), lambda i: (0, 0)),    # W3 (lane-padded)
                pl.BlockSpec((1, D_out_pad), lambda i: (0, 0)),      # b3
            ],
            out_specs=pl.BlockSpec((block_b, D_out_pad), lambda i: (i, 0)),
        ),
        compiler_params=pltpu.CompilerParams(
            dimension_semantics=("parallel",),
            vmem_limit_bytes=vmem_limit,
        ),
        cost_estimate=pl.CostEstimate(
            flops=flops, transcendentals=0, bytes_accessed=bytes_accessed
        ),
    )(x_c, w1_c, b1_c, w2_c, b2_c, w3_c, b3_c)

    # Slice off batch padding and output-lane padding.
    return out_padded[:B, :D_out]


def init_linear_params(key, fan_in, fan_out):
    # Deterministic init mimicking PyTorch nn.Linear: U(-1/sqrt(fan_in), 1/sqrt(fan_in))
    kw, kb = jax.random.split(key)
    bound = 1.0 / jnp.sqrt(fan_in)
    w = jax.random.uniform(kw, (fan_in, fan_out), jnp.float32, -bound, bound)
    b = jax.random.uniform(kb, (1, fan_out), jnp.float32, -bound, bound)
    return w, b


def mlp_reference(x, w1, b1, w2, b2, w3, b3):
    h1 = jnp.maximum(x @ w1 + b1, 0.0)
    h2 = jnp.maximum(h1 @ w2 + b2, 0.0)
    return h2 @ w3 + b3


if __name__ == "__main__":
    # Small shapes consistent with the module. Batch 200 is intentionally ragged:
    # it pads to 256 -> 2 grid steps of 128 rows (even step count for v7x megacore).
    B, D_in, D_h, D_out = 200, 32, 64, 16

    key = jax.random.PRNGKey(0)
    kx, k1, k2, k3 = jax.random.split(key, 4)

    x = jax.random.normal(kx, (B, D_in), jnp.float32)
    w1, b1 = init_linear_params(k1, D_in, D_h)
    w2, b2 = init_linear_params(k2, D_h, D_h)
    w3, b3 = init_linear_params(k3, D_h, D_out)

    ref = mlp_reference(x, w1, b1, w2, b2, w3, b3)

    # bf16 MXU operands (default fast path) -- f32 accumulation, relaxed tolerance.
    out = mlp_forward(x, w1, b1, w2, b2, w3, b3, block_b=128, use_bf16=True)
    out = jax.block_until_ready(out)
    assert out.shape == (B, D_out)
    assert jnp.allclose(out, ref, atol=5e-2, rtol=5e-2), "bf16 path mismatch vs reference"

    # Pure f32 path -- bit-for-bit-level agreement with the reference math.
    out_f32 = mlp_forward(x, w1, b1, w2, b2, w3, b3, block_b=128, use_bf16=False)
    out_f32 = jax.block_until_ready(out_f32)
    assert jnp.allclose(out_f32, ref, atol=1e-5, rtol=1e-5), "f32 path mismatch vs reference"

    print("KERNEL_OK")
</pallas_src>

<mosaic_0001>
module attributes {stable_mosaic.version = 11 : i64} {
  func.func @mlp_kernel(%arg0: i32, %arg1: memref<128x32xbf16, #tpu.memory_space<vmem>>, %arg2: memref<32x64xbf16, #tpu.memory_space<vmem>>, %arg3: memref<1x64xf32, #tpu.memory_space<vmem>>, %arg4: memref<64x64xbf16, #tpu.memory_space<vmem>>, %arg5: memref<1x64xf32, #tpu.memory_space<vmem>>, %arg6: memref<64x128xbf16, #tpu.memory_space<vmem>>, %arg7: memref<1x128xf32, #tpu.memory_space<vmem>>, %arg8: memref<128x128xf32, #tpu.memory_space<vmem>>) attributes {dimension_semantics = [#tpu.dimension_semantics<parallel>], iteration_bounds = array<i64: 2>, scalar_prefetch = 0 : i64, scratch_operands = 0 : i64, tpu.core_type = #tpu.core_type<tc>, window_params = [{transform_indices = @transform_0, window_bounds = array<i64: 128, 32>}, {pipeline_mode = #tpu.pipeline_mode<synchronous>, transform_indices = @transform_1, window_bounds = array<i64: 32, 64>}, {pipeline_mode = #tpu.pipeline_mode<synchronous>, transform_indices = @transform_2, window_bounds = array<i64: 1, 64>}, {pipeline_mode = #tpu.pipeline_mode<synchronous>, transform_indices = @transform_3, window_bounds = array<i64: 64, 64>}, {pipeline_mode = #tpu.pipeline_mode<synchronous>, transform_indices = @transform_4, window_bounds = array<i64: 1, 64>}, {pipeline_mode = #tpu.pipeline_mode<synchronous>, transform_indices = @transform_5, window_bounds = array<i64: 64, 128>}, {pipeline_mode = #tpu.pipeline_mode<synchronous>, transform_indices = @transform_6, window_bounds = array<i64: 1, 128>}, {transform_indices = @transform_7, window_bounds = array<i64: 128, 128>}]} {
    %c0 = arith.constant 0 : index
    %c0_0 = arith.constant 0 : index
    %0 = vector.load %arg1[%c0, %c0_0] : memref<128x32xbf16, #tpu.memory_space<vmem>>, vector<128x32xbf16>
    %c0_1 = arith.constant 0 : index
    %c0_2 = arith.constant 0 : index
    %1 = vector.load %arg2[%c0_1, %c0_2] : memref<32x64xbf16, #tpu.memory_space<vmem>>, vector<32x64xbf16>
    %cst = arith.constant dense<0.000000e+00> : vector<128x64xf32>
    %2 = tpu.matmul %0, %1, %cst {dimension_numbers = #tpu.dot_dimension_numbers<[1], [0], [0], [1], [0, 0, 1, 1], [], []>} : vector<128x32xbf16>, vector<32x64xbf16>, vector<128x64xf32> -> vector<128x64xf32>
    %c0_3 = arith.constant 0 : index
    %c0_4 = arith.constant 0 : index
    %3 = vector.load %arg3[%c0_3, %c0_4] : memref<1x64xf32, #tpu.memory_space<vmem>>, vector<1x64xf32>
    %4 = vector.broadcast %3 : vector<1x64xf32> to vector<128x64xf32>
    %5 = arith.addf %2, %4 : vector<128x64xf32>
    %cst_5 = arith.constant 0.000000e+00 : f32
    %6 = vector.broadcast %cst_5 : f32 to vector<128x64xf32>
    %7 = arith.maximumf %5, %6 : vector<128x64xf32>
    %8 = arith.truncf %7 : vector<128x64xf32> to vector<128x64xbf16>
    %c0_6 = arith.constant 0 : index
    %c0_7 = arith.constant 0 : index
    %9 = vector.load %arg4[%c0_6, %c0_7] : memref<64x64xbf16, #tpu.memory_space<vmem>>, vector<64x64xbf16>
    %cst_8 = arith.constant dense<0.000000e+00> : vector<128x64xf32>
    %10 = tpu.matmul %8, %9, %cst_8 {dimension_numbers = #tpu.dot_dimension_numbers<[1], [0], [0], [1], [0, 0, 1, 1], [], []>} : vector<128x64xbf16>, vector<64x64xbf16>, vector<128x64xf32> -> vector<128x64xf32>
    %c0_9 = arith.constant 0 : index
    %c0_10 = arith.constant 0 : index
    %11 = vector.load %arg5[%c0_9, %c0_10] : memref<1x64xf32, #tpu.memory_space<vmem>>, vector<1x64xf32>
    %12 = vector.broadcast %11 : vector<1x64xf32> to vector<128x64xf32>
    %13 = arith.addf %10, %12 : vector<128x64xf32>
    %cst_11 = arith.constant 0.000000e+00 : f32
    %14 = vector.broadcast %cst_11 : f32 to vector<128x64xf32>
    %15 = arith.maximumf %13, %14 : vector<128x64xf32>
    %16 = arith.truncf %15 : vector<128x64xf32> to vector<128x64xbf16>
    %c0_12 = arith.constant 0 : index
    %c0_13 = arith.constant 0 : index
    %17 = vector.load %arg6[%c0_12, %c0_13] : memref<64x128xbf16, #tpu.memory_space<vmem>>, vector<64x128xbf16>
    %cst_14 = arith.constant dense<0.000000e+00> : vector<128x128xf32>
    %18 = tpu.matmul %16, %17, %cst_14 {dimension_numbers = #tpu.dot_dimension_numbers<[1], [0], [0], [1], [0, 0, 1, 1], [], []>} : vector<128x64xbf16>, vector<64x128xbf16>, vector<128x128xf32> -> vector<128x128xf32>
    %c0_15 = arith.constant 0 : index
    %c0_16 = arith.constant 0 : index
    %19 = vector.load %arg7[%c0_15, %c0_16] : memref<1x128xf32, #tpu.memory_space<vmem>>, vector<1x128xf32>
    %20 = vector.broadcast %19 : vector<1x128xf32> to vector<128x128xf32>
    %21 = arith.addf %18, %20 : vector<128x128xf32>
    %c0_17 = arith.constant 0 : index
    %c0_18 = arith.constant 0 : index
    %22 = vector.load %arg8[%c0_17, %c0_18] : memref<128x128xf32, #tpu.memory_space<vmem>>, vector<128x128xf32>
    tpu.vector_store %arg8[%c0_17, %c0_18], %21 {strides = array<i32>} : memref<128x128xf32, #tpu.memory_space<vmem>>, vector<128x128xf32>,
    return
  }
  func.func @transform_0(%arg0: i32) -> (i32, i32) {
    %c0_i32 = arith.constant 0 : i32
    %c0_i32_0 = arith.constant 0 : i32
    return %arg0, %c0_i32 : i32, i32
  }
  func.func @transform_1(%arg0: i32) -> (i32, i32) {
    %c0_i32 = arith.constant 0 : i32
    %c0_i32_0 = arith.constant 0 : i32
    %c0_i32_1 = arith.constant 0 : i32
    return %c0_i32, %c0_i32_0 : i32, i32
  }
  func.func @transform_2(%arg0: i32) -> (i32, i32) {
    %c0_i32 = arith.constant 0 : i32
    %c0_i32_0 = arith.constant 0 : i32
    %c0_i32_1 = arith.constant 0 : i32
    return %c0_i32, %c0_i32_0 : i32, i32
  }
  func.func @transform_3(%arg0: i32) -> (i32, i32) {
    %c0_i32 = arith.constant 0 : i32
    %c0_i32_0 = arith.constant 0 : i32
    %c0_i32_1 = arith.constant 0 : i32
    return %c0_i32, %c0_i32_0 : i32, i32
  }
  func.func @transform_4(%arg0: i32) -> (i32, i32) {
    %c0_i32 = arith.constant 0 : i32
    %c0_i32_0 = arith.constant 0 : i32
    %c0_i32_1 = arith.constant 0 : i32
    return %c0_i32, %c0_i32_0 : i32, i32
  }
  func.func @transform_5(%arg0: i32) -> (i32, i32) {
    %c0_i32 = arith.constant 0 : i32
    %c0_i32_0 = arith.constant 0 : i32
    %c0_i32_1 = arith.constant 0 : i32
    return %c0_i32, %c0_i32_0 : i32, i32
  }
  func.func @transform_6(%arg0: i32) -> (i32, i32) {
    %c0_i32 = arith.constant 0 : i32
    %c0_i32_0 = arith.constant 0 : i32
    %c0_i32_1 = arith.constant 0 : i32
    return %c0_i32, %c0_i32_0 : i32, i32
  }
  func.func @transform_7(%arg0: i32) -> (i32, i32) {
    %c0_i32 = arith.constant 0 : i32
    %c0_i32_0 = arith.constant 0 : i32
    return %arg0, %c0_i32 : i32, i32
  }
}

</mosaic_0001>

<llo_original>
// kernel: mlp_forward.1
$region0: #{mlp_forward.1}
  #allocation0 [shape = 'u32[]', space=smem, size = 0x4, offset = 0x4, fixed_abs, tag = 'smem constant byte address 0x4 - core index']
  #allocation1 [shape = 'u32[72,128]{1,0:T(1,128)}', space=vmem, size = 0x9000, scoped, tag = 'internal scratch']
  %s0 = inlined_call_operand.vmem [shape: bf16[256,32], index: 0, kind: input, shape index: {}]
  %s1 = inlined_call_operand.vmem [shape: bf16[32,64], index: 1, kind: input, shape index: {}]
  %s2 = inlined_call_operand.vmem [shape: f32[1,64], index: 2, kind: input, shape index: {}]
  %s3 = inlined_call_operand.vmem [shape: bf16[64,64], index: 3, kind: input, shape index: {}]
  %s4 = inlined_call_operand.vmem [shape: f32[1,64], index: 4, kind: input, shape index: {}]
  %s5 = inlined_call_operand.vmem [shape: bf16[64,128], index: 5, kind: input, shape index: {}]
  %s6 = inlined_call_operand.vmem [shape: f32[1,128], index: 6, kind: input, shape index: {}]
  %s7 = inlined_call_operand.vmem [shape: f32[256,128], index: 7, kind: output, shape index: {}]
  %s8 = sld [smem:[#allocation0]]
  $region61: #{mlp_forward.1} parent=0
    _
  %s10 = ssub.s32 1, %s8
  %s11 = scalar_select 0, %s10, %s8
  loop: start=0, step=1, limit=4
  $region2: #{mlp_forward.1} parent=0 // loop_pre_header
    _
  $region3: #{mlp_forward.1} parent=0 // loop_header
    %s13 = sphi 0, %s17
    %p14 = scmp.ge.s32.totalorder %s13, 4
    %s23 = sphi 0, %s25
    %s26 = sphi 0, %s23
    %s27 = sphi 0, %s26
    %s43 = sphi 0, %s27
    %s47 = sphi 0, %s47
    %s49 = sphi 0, %s47
    %s50 = sphi 0, %s49
    %s64 = sphi 0, %s50
    %s68 = sphi 0, %s68
    %s70 = sphi 0, %s68
    %s71 = sphi 0, %s70
    %s85 = sphi 0, %s71
    %s89 = sphi 0, %s89
    %s91 = sphi 0, %s89
    %s92 = sphi 0, %s91
    %s106 = sphi 0, %s92
    %s110 = sphi 0, %s110
    %s112 = sphi 0, %s110
    %s113 = sphi 0, %s112
    %s127 = sphi 0, %s113
    %s131 = sphi 0, %s131
    %s133 = sphi 0, %s131
    %s134 = sphi 0, %s133
    %s148 = sphi 0, %s134
    %s152 = sphi 0, %s152
    %s154 = sphi 0, %s152
    %s155 = sphi 0, %s154
    %s169 = sphi 0, %s155
    %s175 = sphi 0, %s177
    %s178 = sphi 0, %s175
    %s179 = sphi 0, %s178
    %s195 = sphi 0, %s179
  $region4: #{mlp_forward.1} parent=0 // loop_header_branch
    %16 = sbr.rel (%p14) target = $region8
  $region5: #{mlp_forward.1} parent=0 // loop_body
    %s18 = ssub.s32 %s13, 1
    %s19 = ssub.s32 %s13, 2
    %s20 = sadd.s32 %s13, 1
    %s21 = ssub.s32 %s13, %s20
    %p22 = scmp.eq.s32.totalorder %s21, 0
    %s24 = sadd.s32 %s23, 1
    %s25 = scalar_select %p22, %s23, %s24
    %p28 = pneg %p22
    %p29 = scmp.eq.s32.totalorder %s13, 1
    %p30 = por %p28, %p29
    %p31 = scmp.ne.s32.totalorder %s23, %s26
    %p32 = scmp.eq.s32.totalorder %s13, 0
    %p33 = por %p31, %p32
    %p34 = scmp.ne.s32.totalorder %s23, %s26
    %p35 = scmp.eq.s32.totalorder %s18, 1
    %p36 = por %p34, %p35
    %p37 = scmp.ne.s32.totalorder %s26, %s27
    %p38 = scmp.eq.s32.totalorder %s18, 0
    %p39 = por %p37, %p38
    %p40 = scmp.ne.s32.totalorder %s26, %s27
    %p41 = scmp.eq.s32.totalorder %s19, 1
    %p42 = por %p40, %p41
    %p44 = scmp.ne.s32.totalorder %s27, %s43
    %p45 = scmp.eq.s32.totalorder %s19, 0
    %p46 = por %p44, %p45
    %s48 = sadd.s32 %s47, 1
    %p51 = scmp.eq.s32.totalorder %s13, 1
    %p52 = scmp.ne.s32.totalorder %s47, %s49
    %p53 = scmp.eq.s32.totalorder %s13, 0
    %p54 = por %p52, %p53
    %p55 = scmp.ne.s32.totalorder %s47, %s49
    %p56 = scmp.eq.s32.totalorder %s18, 1
    %p57 = por %p55, %p56
    %p58 = scmp.ne.s32.totalorder %s49, %s50
    %p59 = scmp.eq.s32.totalorder %s18, 0
    %p60 = por %p58, %p59
    %p61 = scmp.ne.s32.totalorder %s49, %s50
    %p62 = scmp.eq.s32.totalorder %s19, 1
    %p63 = por %p61, %p62
    %p65 = scmp.ne.s32.totalorder %s50, %s64
    %p66 = scmp.eq.s32.totalorder %s19, 0
    %p67 = por %p65, %p66
    %s69 = sadd.s32 %s68, 1
    %p72 = scmp.eq.s32.totalorder %s13, 1
    %p73 = scmp.ne.s32.totalorder %s68, %s70
    %p74 = scmp.eq.s32.totalorder %s13, 0
    %p75 = por %p73, %p74
    %p76 = scmp.ne.s32.totalorder %s68, %s70
    %p77 = scmp.eq.s32.totalorder %s18, 1
    %p78 = por %p76, %p77
    %p79 = scmp.ne.s32.totalorder %s70, %s71
    %p80 = scmp.eq.s32.totalorder %s18, 0
    %p81 = por %p79, %p80
    %p82 = scmp.ne.s32.totalorder %s70, %s71
    %p83 = scmp.eq.s32.totalorder %s19, 1
    %p84 = por %p82, %p83
    %p86 = scmp.ne.s32.totalorder %s71, %s85
    %p87 = scmp.eq.s32.totalorder %s19, 0
    %p88 = por %p86, %p87
    %s90 = sadd.s32 %s89, 1
    %p93 = scmp.eq.s32.totalorder %s13, 1
    %p94 = scmp.ne.s32.totalorder %s89, %s91
    %p95 = scmp.eq.s32.totalorder %s13, 0
    %p96 = por %p94, %p95
    %p97 = scmp.ne.s32.totalorder %s89, %s91
    %p98 = scmp.eq.s32.totalorder %s18, 1
    %p99 = por %p97, %p98
    %p100 = scmp.ne.s32.totalorder %s91, %s92
    %p101 = scmp.eq.s32.totalorder %s18, 0
    %p102 = por %p100, %p101
    %p103 = scmp.ne.s32.totalorder %s91, %s92
    %p104 = scmp.eq.s32.totalorder %s19, 1
    %p105 = por %p103, %p104
    %p107 = scmp.ne.s32.totalorder %s92, %s106
    %p108 = scmp.eq.s32.totalorder %s19, 0
    %p109 = por %p107, %p108
    %s111 = sadd.s32 %s110, 1
    %p114 = scmp.eq.s32.totalorder %s13, 1
    %p115 = scmp.ne.s32.totalorder %s110, %s112
    %p116 = scmp.eq.s32.totalorder %s13, 0
    %p117 = por %p115, %p116
    %p118 = scmp.ne.s32.totalorder %s110, %s112
    %p119 = scmp.eq.s32.totalorder %s18, 1
    %p120 = por %p118, %p119
    %p121 = scmp.ne.s32.totalorder %s112, %s113
    %p122 = scmp.eq.s32.totalorder %s18, 0
    %p123 = por %p121, %p122
    %p124 = scmp.ne.s32.totalorder %s112, %s113
    %p125 = scmp.eq.s32.totalorder %s19, 1
    %p126 = por %p124, %p125
    %p128 = scmp.ne.s32.totalorder %s113, %s127
    %p129 = scmp.eq.s32.totalorder %s19, 0
    %p130 = por %p128, %p129
    %s132 = sadd.s32 %s131, 1
    %p135 = scmp.eq.s32.totalorder %s13, 1
    %p136 = scmp.ne.s32.totalorder %s131, %s133
    %p137 = scmp.eq.s32.totalorder %s13, 0
    %p138 = por %p136, %p137
    %p139 = scmp.ne.s32.totalorder %s131, %s133
    %p140 = scmp.eq.s32.totalorder %s18, 1
    %p141 = por %p139, %p140
    %p142 = scmp.ne.s32.totalorder %s133, %s134
    %p143 = scmp.eq.s32.totalorder %s18, 0
    %p144 = por %p142, %p143
    %p145 = scmp.ne.s32.totalorder %s133, %s134
    %p146 = scmp.eq.s32.totalorder %s19, 1
    %p147 = por %p145, %p146
    %p149 = scmp.ne.s32.totalorder %s134, %s148
    %p150 = scmp.eq.s32.totalorder %s19, 0
    %p151 = por %p149, %p150
    %s153 = sadd.s32 %s152, 1
    %p156 = scmp.eq.s32.totalorder %s13, 1
    %p157 = scmp.ne.s32.totalorder %s152, %s154
    %p158 = scmp.eq.s32.totalorder %s13, 0
    %p159 = por %p157, %p158
    %p160 = scmp.ne.s32.totalorder %s152, %s154
    %p161 = scmp.eq.s32.totalorder %s18, 1
    %p162 = por %p160, %p161
    %p163 = scmp.ne.s32.totalorder %s154, %s155
    %p164 = scmp.eq.s32.totalorder %s18, 0
    %p165 = por %p163, %p164
    %p166 = scmp.ne.s32.totalorder %s154, %s155
    %p167 = scmp.eq.s32.totalorder %s19, 1
    %p168 = por %p166, %p167
    %p170 = scmp.ne.s32.totalorder %s155, %s169
    %p171 = scmp.eq.s32.totalorder %s19, 0
    %p172 = por %p170, %p171
    %s173 = ssub.s32 %s13, %s20
    %p174 = scmp.eq.s32.totalorder %s173, 0
    %s176 = sadd.s32 %s175, 1
    %s177 = scalar_select %p174, %s175, %s176
    %p180 = pneg %p174
    %p181 = scmp.eq.s32.totalorder %s13, 1
    %p182 = por %p180, %p181
    %p183 = scmp.ne.s32.totalorder %s175, %s178
    %p184 = scmp.eq.s32.totalorder %s13, 0
    %p185 = por %p183, %p184
    %p186 = scmp.ne.s32.totalorder %s175, %s178
    %p187 = scmp.eq.s32.totalorder %s18, 1
    %p188 = por %p186, %p187
    %p189 = scmp.ne.s32.totalorder %s178, %s179
    %p190 = scmp.eq.s32.totalorder %s18, 0
    %p191 = por %p189, %p190
    %p192 = scmp.ne.s32.totalorder %s178, %s179
    %p193 = scmp.eq.s32.totalorder %s19, 1
    %p194 = por %p192, %p193
    %p196 = scmp.ne.s32.totalorder %s179, %s195
    %p197 = scmp.eq.s32.totalorder %s19, 0
    %p198 = por %p196, %p197
    %p199 = scmp.le.s32.totalorder 1, %s13
    %p200 = scmp.lt.s32.totalorder %s13, 3
    %p201 = pnand %p199, %p200
    %p202 = pneg %p201
    // Predicated region
    $region9: #{mlp_forward.1} parent=5 // pred_check
      _
    $region10: #{mlp_forward.1} parent=5 // pred_check_branch
      %204 = sbr.rel (%p201) target = $region12
    $region11: #{mlp_forward.1} parent=5 // pred_region
      %s205 = ssub.s32 %s13, 1
      // Predicated region
      $region13: #{mlp_forward.1} parent=11 // pred_check
        %p206 = pneg %p60
      $region14: #{mlp_forward.1} parent=11 // pred_check_branch
        %208 = sbr.rel (%p206) target = $region16
      $region15: #{mlp_forward.1} parent=11 // pred_region
        _
      $region16: #{mlp_forward.1} parent=11 // pred_fallthru
        _
      // Predicated region
      $region17: #{mlp_forward.1} parent=11 // pred_check
        %p209 = pneg %p81
      $region18: #{mlp_forward.1} parent=11 // pred_check_branch
        %211 = sbr.rel (%p209) target = $region20
      $region19: #{mlp_forward.1} parent=11 // pred_region
        _
      $region20: #{mlp_forward.1} parent=11 // pred_fallthru
        _
      // Predicated region
      $region21: #{mlp_forward.1} parent=11 // pred_check
        %p212 = pneg %p102
      $region22: #{mlp_forward.1} parent=11 // pred_check_branch
        %214 = sbr.rel (%p212) target = $region24
      $region23: #{mlp_forward.1} parent=11 // pred_region
        _
      $region24: #{mlp_forward.1} parent=11 // pred_fallthru
        _
      // Predicated region
      $region25: #{mlp_forward.1} parent=11 // pred_check
        %p215 = pneg %p123
      $region26: #{mlp_forward.1} parent=11 // pred_check_branch
        %217 = sbr.rel (%p215) target = $region28
      $region27: #{mlp_forward.1} parent=11 // pred_region
        _
      $region28: #{mlp_forward.1} parent=11 // pred_fallthru
        _
      // Predicated region
      $region29: #{mlp_forward.1} parent=11 // pred_check
        %p218 = pneg %p144
      $region30: #{mlp_forward.1} parent=11 // pred_check_branch
        %220 = sbr.rel (%p218) target = $region32
      $region31: #{mlp_forward.1} parent=11 // pred_region
        _
      $region32: #{mlp_forward.1} parent=11 // pred_fallthru
        _
      // Predicated region
      $region33: #{mlp_forward.1} parent=11 // pred_check
        %p221 = pneg %p165
      $region34: #{mlp_forward.1} parent=11 // pred_check_branch
        %223 = sbr.rel (%p221) target = $region36
      $region35: #{mlp_forward.1} parent=11 // pred_region
        _
      $region36: #{mlp_forward.1} parent=11 // pred_fallthru
        _
    $region12: #{mlp_forward.1} parent=5 // pred_fallthru
      _
    %p224 = scmp.lt.s32.totalorder %s13, 2
    // Predicated region
    $region37: #{mlp_forward.1} parent=5 // pred_check
      %p225 = pneg %p224
    $region38: #{mlp_forward.1} parent=5 // pred_check_branch
      %227 = sbr.rel (%p225) target = $region40
    $region39: #{mlp_forward.1} parent=5 // pred_region
      // Predicated region
      $region41: #{mlp_forward.1} parent=39 // pred_check
        %p228 = pneg %p33
      $region42: #{mlp_forward.1} parent=39 // pred_check_branch
        %230 = sbr.rel (%p228) target = $region44
      $region43: #{mlp_forward.1} parent=39 // pred_region
        %s231 = smul.u32 16, %s13
        %p232 = scmp.lt.s32.totalorder %s231, 31
        %s233 = scalar_select %p232, %s231, 31
        %s234 = smul.addr %s233, 4
        %s235 = scalar_lea.vmem %s0, %s234
        %s236 = smul.u32 16, %s13
      $region44: #{mlp_forward.1} parent=39 // pred_fallthru
        _
    $region40: #{mlp_forward.1} parent=5 // pred_fallthru
      _
    %p237 = scmp.le.s32.totalorder 1, %s13
    %p238 = scmp.lt.s32.totalorder %s13, 3
    %p239 = pnand %p237, %p238
    %p240 = pneg %p239
    // Predicated region
    $region45: #{mlp_forward.1} parent=5 // pred_check
      _
    $region46: #{mlp_forward.1} parent=5 // pred_check_branch
      %242 = sbr.rel (%p239) target = $region48
    $region47: #{mlp_forward.1} parent=5 // pred_region
      %s243 = ssub.s32 %s13, 1
      %s244 = smul.u32 16, %s18
      %p245 = scmp.lt.s32.totalorder %s244, 31
      %s246 = scalar_select %p245, %s244, 31
      %s247 = smul.addr %s246, 4
      %s248 = scalar_lea.vmem %s0, %s247
      %p249 = pneg %p39
      %p250 = pneg %p36
      %p251 = pneg %p60
      %p252 = pneg %p57
      %p253 = pneg %p81
      %p254 = pneg %p78
      %p255 = pneg %p102
      %p256 = pneg %p99
      %p257 = pneg %p123
      %p258 = pneg %p120
      %p259 = pneg %p144
      %p260 = pneg %p141
      %p261 = pneg %p165
      %p262 = pneg %p162
      %p263 = pneg %p191
      %p264 = pneg %p188
      %s265 = smul.u32 16, %s18
      %p266 = scmp.lt.s32.totalorder %s265, 31
      %s267 = scalar_select %p266, %s265, 31
      %s268 = smul.addr %s267, 8
      %s269 = scalar_lea.vmem %s7, %s268
      %s270 = smul.u32 16, %s18
      %p271 = scmp.lt.s32.totalorder %s270, 31
      %s272 = scalar_select %p271, %s270, 31
      %s273 = smul.addr %s272, 4
      %s274 = scalar_lea.vmem %s0, %s273
      %s275 = smul.u32 16, %s18
      %s276 = smul.u32 16, %s18
      %p277 = scmp.lt.s32.totalorder %s276, 31
      %s278 = scalar_select %p277, %s276, 31
      %s279 = smul.addr %s278, 8
      %s280 = scalar_lea.vmem %s7, %s279
      %s281 = smul.u32 16, %s18
      %v283 = vld [vmem:[%s274] sm:$0xf]
      %v284 = vld [vmem:[%s274 + $0x4] sm:$0xf]
      %v285 = vld [vmem:[%s274 + $0x8] sm:$0xf]
      %v286 = vld [vmem:[%s274 + $0xc] sm:$0xf]
      %v287 = vld [vmem:[%s274 + $0x10] sm:$0xf]
      %v288 = vld [vmem:[%s274 + $0x14] sm:$0xf]
      %v289 = vld [vmem:[%s274 + $0x18] sm:$0xf]
      %v290 = vld [vmem:[%s274 + $0x1c] sm:$0xf]
      %v291 = vld [vmem:[%s274 + $0x20] sm:$0xf]
      %v292 = vld [vmem:[%s274 + $0x24] sm:$0xf]
      %v293 = vld [vmem:[%s274 + $0x28] sm:$0xf]
      %v294 = vld [vmem:[%s274 + $0x2c] sm:$0xf]
      %v295 = vld [vmem:[%s274 + $0x30] sm:$0xf]
      %v296 = vld [vmem:[%s274 + $0x34] sm:$0xf]
      %v297 = vld [vmem:[%s274 + $0x38] sm:$0xf]
      %v298 = vld [vmem:[%s274 + $0x3c] sm:$0xf]
      %v299 = vld [vmem:[%s1] sm:$0xf]
      %v300 = vld [vmem:[%s1 + $0x4] sm:$0xf]
      %v301 = vld [vmem:[%s1 + $0x8] sm:$0xf]
      %v302 = vld [vmem:[%s1 + $0xc] sm:$0xf]
      %v303 = vld [vmem:[%s2] sm:$0x1]
      %v305 = vperm.slane %v303, 0
      %v323 = vunpack.c.l.b16 %v283
      %v324 = vunpack.c.l.b16 %v284
      %v325 = vunpack.c.l.b16 %v285
      %v326 = vunpack.c.l.b16 %v286
      %v327 = vunpack.c.l.b16 %v287
      %v328 = vunpack.c.l.b16 %v288
      %v329 = vunpack.c.l.b16 %v289
      %v330 = vunpack.c.l.b16 %v290
      %v331 = vunpack.c.l.b16 %v291
      %v332 = vunpack.c.l.b16 %v292
      %v333 = vunpack.c.l.b16 %v293
      %v334 = vunpack.c.l.b16 %v294
      %v335 = vunpack.c.l.b16 %v295
      %v336 = vunpack.c.l.b16 %v296
      %v337 = vunpack.c.l.b16 %v297
      %v338 = vunpack.c.l.b16 %v298
      %v339 = vpack.c.b16 %v324, %v323
      %v340 = vpack.c.b16 %v326, %v325
      %v341 = vpack.c.b16 %v328, %v327
      %v342 = vpack.c.b16 %v330, %v329
      %v343 = vpack.c.b16 %v332, %v331
      %v344 = vpack.c.b16 %v334, %v333
      %v345 = vpack.c.b16 %v336, %v335
      %v346 = vpack.c.b16 %v338, %v337
      %v351 = vunpack.c.l.b16 %v299
      %v352 = vunpack.c.l.b16 %v300
      %v353 = vunpack.c.l.b16 %v301
      %v354 = vunpack.c.l.b16 %v302
      %v355 = vpack.c.b16 %v352, %v351
      %v356 = vpack.c.b16 %v354, %v353
      %vm359 = vcmask 261120
      %v361 = vsel %vm359, %v339, 0
      %v364 = vsel %vm359, %v340, 0
      %v367 = vsel %vm359, %v341, 0
      %v370 = vsel %vm359, %v342, 0
      %v373 = vsel %vm359, %v343, 0
      %v376 = vsel %vm359, %v344, 0
      %v379 = vsel %vm359, %v345, 0
      %v382 = vsel %vm359, %v346, 0
      %384 = vmatpush.bf16.msra.mxu0 0
      %385 = vmatpush.bf16.msra.mxu0 0
      %386 = vmatpush.bf16.msra.mxu0 0
      %387 = vmatpush.bf16.msra.mxu0 0
      %388 = vmatpush.bf16.msra.mxu0 0
      %389 = vmatpush.bf16.msra.mxu0 0
      %390 = vmatpush.bf16.msra.mxu0 %v356
      %391 = vmatpush.bf16.msra.mxu0 %v355
      %392 = vmatmul.bf16.gmra.mxu0 %v361
      %v393 = vpop.f32.mrf.mxu0
      %v394 = vadd.f32 %v305, %v393
      %v395 = vpop.f32.mrf.mxu0
      %v396 = vadd.f32 %v305, %v395
      %397 = vmatmul.bf16.gmra.mxu0 %v364
      %v398 = vpop.f32.mrf.mxu0
      %v399 = vadd.f32 %v305, %v398
      %v400 = vpop.f32.mrf.mxu0
      %v401 = vadd.f32 %v305, %v400
      %402 = vmatmul.bf16.gmra.mxu0 %v367
      %v403 = vpop.f32.mrf.mxu0
      %v404 = vadd.f32 %v305, %v403
      %v405 = vpop.f32.mrf.mxu0
      %v406 = vadd.f32 %v305, %v405
      %407 = vmatmul.bf16.gmra.mxu0 %v370
      %v408 = vpop.f32.mrf.mxu0
      %v409 = vadd.f32 %v305, %v408
      %v410 = vpop.f32.mrf.mxu0
      %v411 = vadd.f32 %v305, %v410
      %412 = vmatmul.bf16.gmra.mxu0 %v373
      %v413 = vpop.f32.mrf.mxu0
      %v414 = vadd.f32 %v305, %v413
      %v415 = vpop.f32.mrf.mxu0
      %v416 = vadd.f32 %v305, %v415
      %417 = vmatmul.bf16.gmra.mxu0 %v376
      %v418 = vpop.f32.mrf.mxu0
      %v419 = vadd.f32 %v305, %v418
      %v420 = vpop.f32.mrf.mxu0
      %v421 = vadd.f32 %v305, %v420
      %422 = vmatmul.bf16.gmra.mxu0 %v379
      %v423 = vpop.f32.mrf.mxu0
      %v424 = vadd.f32 %v305, %v423
      %v425 = vpop.f32.mrf.mxu0
      %v426 = vadd.f32 %v305, %v425
      %427 = vmatmul.bf16.gmra.mxu0 %v382
      %v428 = vpop.f32.mrf.mxu0
      %v429 = vadd.f32 %v305, %v428
      %v430 = vpop.f32.mrf.mxu0
      %v431 = vadd.f32 %v305, %v430
      %432 = vdwg.mxu0
      %v433 = vmax.f32 %v394, 0.0
      %v434 = vmax.f32 %v396, 0.0
      %v435 = vmax.f32 %v399, 0.0
      %v436 = vmax.f32 %v401, 0.0
      %v437 = vmax.f32 %v404, 0.0
      %v438 = vmax.f32 %v406, 0.0
      %v439 = vmax.f32 %v409, 0.0
      %v440 = vmax.f32 %v411, 0.0
      %v441 = vmax.f32 %v414, 0.0
      %v442 = vmax.f32 %v416, 0.0
      %v443 = vmax.f32 %v419, 0.0
      %v444 = vmax.f32 %v421, 0.0
      %v445 = vmax.f32 %v424, 0.0
      %v446 = vmax.f32 %v426, 0.0
      %v447 = vmax.f32 %v429, 0.0
      %v448 = vmax.f32 %v431, 0.0
      %v449 = vpack.c.bf16 %v434, %v433
      %v450 = vpack.c.bf16 %v436, %v435
      %v451 = vpack.c.bf16 %v438, %v437
      %v452 = vpack.c.bf16 %v440, %v439
      %v453 = vpack.c.bf16 %v442, %v441
      %v454 = vpack.c.bf16 %v444, %v443
      %v455 = vpack.c.bf16 %v446, %v445
      %v456 = vpack.c.bf16 %v448, %v447
      %v457 = vld [vmem:[%s3] sm:$0xf]
      %v458 = vld [vmem:[%s3 + $0x4] sm:$0xf]
      %v459 = vld [vmem:[%s3 + $0x8] sm:$0xf]
      %v460 = vld [vmem:[%s3 + $0xc] sm:$0xf]
      %v461 = vld [vmem:[%s3 + $0x10] sm:$0xf]
      %v462 = vld [vmem:[%s3 + $0x14] sm:$0xf]
      %v463 = vld [vmem:[%s3 + $0x18] sm:$0xf]
      %v464 = vld [vmem:[%s3 + $0x1c] sm:$0xf]
      %v465 = vld [vmem:[%s4] sm:$0x1]
      %v467 = vperm.slane %v465, 0
      %v477 = vunpack.c.l.b16 %v457
      %v478 = vunpack.c.l.b16 %v458
      %v479 = vunpack.c.l.b16 %v459
      %v480 = vunpack.c.l.b16 %v460
      %v481 = vunpack.c.l.b16 %v461
      %v482 = vunpack.c.l.b16 %v462
      %v483 = vunpack.c.l.b16 %v463
      %v484 = vunpack.c.l.b16 %v464
      %v485 = vpack.c.b16 %v478, %v477
      %v486 = vpack.c.b16 %v480, %v479
      %v487 = vpack.c.b16 %v482, %v481
      %v488 = vpack.c.b16 %v484, %v483
      %vm493 = vcmask 523264
      %v495 = vsel %vm493, %v449, 0
      %v498 = vsel %vm493, %v450, 0
      %v501 = vsel %vm493, %v451, 0
      %v504 = vsel %vm493, %v452, 0
      %v507 = vsel %vm493, %v453, 0
      %v510 = vsel %vm493, %v454, 0
      %v513 = vsel %vm493, %v455, 0
      %v516 = vsel %vm493, %v456, 0
      %518 = vmatpush.bf16.msra.mxu0 0
      %519 = vmatpush.bf16.msra.mxu0 0
      %520 = vmatpush.bf16.msra.mxu0 0
      %521 = vmatpush.bf16.msra.mxu0 0
      %522 = vmatpush.bf16.msra.mxu0 %v488
      %523 = vmatpush.bf16.msra.mxu0 %v487
      %524 = vmatpush.bf16.msra.mxu0 %v486
      %525 = vmatpush.bf16.msra.mxu0 %v485
      %526 = vmatmul.bf16.gmra.mxu0 %v495
      %v527 = vpop.f32.mrf.mxu0
      %v528 = vadd.f32 %v467, %v527
      %v529 = vpop.f32.mrf.mxu0
      %v530 = vadd.f32 %v467, %v529
      %531 = vmatmul.bf16.gmra.mxu0 %v498
      %v532 = vpop.f32.mrf.mxu0
      %v533 = vadd.f32 %v467, %v532
      %v534 = vpop.f32.mrf.mxu0
      %v535 = vadd.f32 %v467, %v534
      %536 = vmatmul.bf16.gmra.mxu0 %v501
      %v537 = vpop.f32.mrf.mxu0
      %v538 = vadd.f32 %v467, %v537
      %v539 = vpop.f32.mrf.mxu0
      %v540 = vadd.f32 %v467, %v539
      %541 = vmatmul.bf16.gmra.mxu0 %v504
      %v542 = vpop.f32.mrf.mxu0
      %v543 = vadd.f32 %v467, %v542
      %v544 = vpop.f32.mrf.mxu0
      %v545 = vadd.f32 %v467, %v544
      %546 = vmatmul.bf16.gmra.mxu0 %v507
      %v547 = vpop.f32.mrf.mxu0
      %v548 = vadd.f32 %v467, %v547
      %v549 = vpop.f32.mrf.mxu0
      %v550 = vadd.f32 %v467, %v549
      %551 = vmatmul.bf16.gmra.mxu0 %v510
      %v552 = vpop.f32.mrf.mxu0
      %v553 = vadd.f32 %v467, %v552
      %v554 = vpop.f32.mrf.mxu0
      %v555 = vadd.f32 %v467, %v554
      %556 = vmatmul.bf16.gmra.mxu0 %v513
      %v557 = vpop.f32.mrf.mxu0
      %v558 = vadd.f32 %v467, %v557
      %v559 = vpop.f32.mrf.mxu0
      %v560 = vadd.f32 %v467, %v559
      %561 = vmatmul.bf16.gmra.mxu0 %v516
      %v562 = vpop.f32.mrf.mxu0
      %v563 = vadd.f32 %v467, %v562
      %v564 = vpop.f32.mrf.mxu0
      %v565 = vadd.f32 %v467, %v564
      %566 = vdwg.mxu0
      %v567 = vmax.f32 %v528, 0.0
      %v568 = vmax.f32 %v530, 0.0
      %v569 = vmax.f32 %v533, 0.0
      %v570 = vmax.f32 %v535, 0.0
      %v571 = vmax.f32 %v538, 0.0
      %v572 = vmax.f32 %v540, 0.0
      %v573 = vmax.f32 %v543, 0.0
      %v574 = vmax.f32 %v545, 0.0
      %v575 = vmax.f32 %v548, 0.0
      %v576 = vmax.f32 %v550, 0.0
      %v577 = vmax.f32 %v553, 0.0
      %v578 = vmax.f32 %v555, 0.0
      %v579 = vmax.f32 %v558, 0.0
      %v580 = vmax.f32 %v560, 0.0
      %v581 = vmax.f32 %v563, 0.0
      %v582 = vmax.f32 %v565, 0.0
      %v583 = vpack.c.bf16 %v568, %v567
      %v584 = vpack.c.bf16 %v570, %v569
      %v585 = vpack.c.bf16 %v572, %v571
      %v586 = vpack.c.bf16 %v574, %v573
      %v587 = vpack.c.bf16 %v576, %v575
      %v588 = vpack.c.bf16 %v578, %v577
      %v589 = vpack.c.bf16 %v580, %v579
      %v590 = vpack.c.bf16 %v582, %v581
      %v591 = vld [vmem:[%s5] sm:$0xf]
      %v592 = vld [vmem:[%s5 + $0x4] sm:$0xf]
      %v593 = vld [vmem:[%s5 + $0x8] sm:$0xf]
      %v594 = vld [vmem:[%s5 + $0xc] sm:$0xf]
      %v595 = vld [vmem:[%s5 + $0x10] sm:$0xf]
      %v596 = vld [vmem:[%s5 + $0x14] sm:$0xf]
      %v597 = vld [vmem:[%s5 + $0x18] sm:$0xf]
      %v598 = vld [vmem:[%s5 + $0x1c] sm:$0xf]
      %v599 = vld [vmem:[%s6] sm:$0x1]
      %v601 = vperm.slane %v599, 0
      %v611 = vunpack.c.l.b16 %v591
      %v612 = vunpack.c.l.b16 %v592
      %v613 = vunpack.c.l.b16 %v593
      %v614 = vunpack.c.l.b16 %v594
      %v615 = vunpack.c.l.b16 %v595
      %v616 = vunpack.c.l.b16 %v596
      %v617 = vunpack.c.l.b16 %v597
      %v618 = vunpack.c.l.b16 %v598
      %v619 = vpack.c.b16 %v612, %v611
      %v620 = vpack.c.b16 %v614, %v613
      %v621 = vpack.c.b16 %v616, %v615
      %v622 = vpack.c.b16 %v618, %v617
      %v628 = vsel %vm493, %v583, 0
      %v631 = vsel %vm493, %v584, 0
      %v634 = vsel %vm493, %v585, 0
      %v637 = vsel %vm493, %v586, 0
      %v640 = vsel %vm493, %v587, 0
      %v643 = vsel %vm493, %v588, 0
      %v646 = vsel %vm493, %v589, 0
      %v649 = vsel %vm493, %v590, 0
      %651 = vmatpush.bf16.msra.mxu0 0
      %652 = vmatpush.bf16.msra.mxu0 0
      %653 = vmatpush.bf16.msra.mxu0 0
      %654 = vmatpush.bf16.msra.mxu0 0
      %655 = vmatpush.bf16.msra.mxu0 %v622
      %656 = vmatpush.bf16.msra.mxu0 %v621
      %657 = vmatpush.bf16.msra.mxu0 %v620
      %658 = vmatpush.bf16.msra.mxu0 %v619
      %659 = vmatmul.bf16.gmra.mxu0 %v628
      %v660 = vpop.f32.mrf.mxu0
      %v661 = vadd.f32 %v601, %v660
      %v662 = vpop.f32.mrf.mxu0
      %v663 = vadd.f32 %v601, %v662
      %664 = vmatmul.bf16.gmra.mxu0 %v631
      %v665 = vpop.f32.mrf.mxu0
      %v666 = vadd.f32 %v601, %v665
      %v667 = vpop.f32.mrf.mxu0
      %v668 = vadd.f32 %v601, %v667
      %669 = vmatmul.bf16.gmra.mxu0 %v634
      %v670 = vpop.f32.mrf.mxu0
      %v671 = vadd.f32 %v601, %v670
      %v672 = vpop.f32.mrf.mxu0
      %v673 = vadd.f32 %v601, %v672
      %674 = vmatmul.bf16.gmra.mxu0 %v637
      %v675 = vpop.f32.mrf.mxu0
      %v676 = vadd.f32 %v601, %v675
      %v677 = vpop.f32.mrf.mxu0
      %v678 = vadd.f32 %v601, %v677
      %679 = vmatmul.bf16.gmra.mxu0 %v640
      %v680 = vpop.f32.mrf.mxu0
      %v681 = vadd.f32 %v601, %v680
      %v682 = vpop.f32.mrf.mxu0
      %v683 = vadd.f32 %v601, %v682
      %684 = vmatmul.bf16.gmra.mxu0 %v643
      %v685 = vpop.f32.mrf.mxu0
      %v686 = vadd.f32 %v601, %v685
      %v687 = vpop.f32.mrf.mxu0
      %v688 = vadd.f32 %v601, %v687
      %689 = vmatmul.bf16.gmra.mxu0 %v646
      %v690 = vpop.f32.mrf.mxu0
      %v691 = vadd.f32 %v601, %v690
      %v692 = vpop.f32.mrf.mxu0
      %v693 = vadd.f32 %v601, %v692
      %694 = vmatmul.bf16.gmra.mxu0 %v649
      %v695 = vpop.f32.mrf.mxu0
      %v696 = vadd.f32 %v601, %v695
      %v697 = vpop.f32.mrf.mxu0
      %v698 = vadd.f32 %v601, %v697
      %699 = vdwg.mxu0
      %700 = vst [vmem:[%s280] sm:$0xff] %v661
      %701 = vst [vmem:[%s280 + $0x8] sm:$0xff] %v663
      %702 = vst [vmem:[%s280 + $0x10] sm:$0xff] %v666
      %703 = vst [vmem:[%s280 + $0x18] sm:$0xff] %v668
      %704 = vst [vmem:[%s280 + $0x20] sm:$0xff] %v671
      %705 = vst [vmem:[%s280 + $0x28] sm:$0xff] %v673
      %706 = vst [vmem:[%s280 + $0x30] sm:$0xff] %v676
      %707 = vst [vmem:[%s280 + $0x38] sm:$0xff] %v678
      %708 = vst [vmem:[%s280 + $0x40] sm:$0xff] %v681
      %709 = vst [vmem:[%s280 + $0x48] sm:$0xff] %v683
      %710 = vst [vmem:[%s280 + $0x50] sm:$0xff] %v686
      %711 = vst [vmem:[%s280 + $0x58] sm:$0xff] %v688
      %712 = vst [vmem:[%s280 + $0x60] sm:$0xff] %v691
      %713 = vst [vmem:[%s280 + $0x68] sm:$0xff] %v693
      %714 = vst [vmem:[%s280 + $0x70] sm:$0xff] %v696
      %715 = vst [vmem:[%s280 + $0x78] sm:$0xff] %v698
      %s716 = smul.u32 16, %s18
      %p717 = scmp.lt.s32.totalorder %s716, 31
      %s718 = scalar_select %p717, %s716, 31
      %s719 = smul.addr %s718, 8
      %s720 = scalar_lea.vmem %s7, %s719
      // Predicated region
      $region49: #{mlp_forward.1} parent=47 // pred_check
        %p721 = pneg %p188
      $region50: #{mlp_forward.1} parent=47 // pred_check_branch
        %723 = sbr.rel (%p721) target = $region52
      $region51: #{mlp_forward.1} parent=47 // pred_region
        %s724 = smul.u32 16, %s18
      $region52: #{mlp_forward.1} parent=47 // pred_fallthru
        _
    $region48: #{mlp_forward.1} parent=5 // pred_fallthru
      _
    %p725 = scmp.le.s32.totalorder 2, %s13
    // Predicated region
    $region53: #{mlp_forward.1} parent=5 // pred_check
      %p726 = pneg %p725
    $region54: #{mlp_forward.1} parent=5 // pred_check_branch
      %728 = sbr.rel (%p726) target = $region56
    $region55: #{mlp_forward.1} parent=5 // pred_region
      %s729 = ssub.s32 %s13, 2
      // Predicated region
      $region57: #{mlp_forward.1} parent=55 // pred_check
        %p730 = pneg %p194
      $region58: #{mlp_forward.1} parent=55 // pred_check_branch
        %732 = sbr.rel (%p730) target = $region60
      $region59: #{mlp_forward.1} parent=55 // pred_region
        %s733 = smul.u32 16, %s19
        %p734 = scmp.lt.s32.totalorder %s733, 31
        %s735 = scalar_select %p734, %s733, 31
        %s736 = smul.addr %s735, 8
        %s737 = scalar_lea.vmem %s7, %s736
      $region60: #{mlp_forward.1} parent=55 // pred_fallthru
        _
    $region56: #{mlp_forward.1} parent=5 // pred_fallthru
      _
  $region6: #{mlp_forward.1} parent=0 // loop_footer
    %s17 = sadd.s32 1, %s13
  $region7: #{mlp_forward.1} parent=0 // loop_footer_branch
    %12 = sbr.rel target = $region3
  $region8: #{mlp_forward.1} parent=0 // loop_exit
    _

</llo_original>
